<compile_context>
chip_gen: v6e
topology: v6e:2x2x1
jax: 0.10.0
libtpu: 0.0.40
codegen_flags: <defaults>
</compile_context>

<pallas_src>
import functools

import jax
import jax.numpy as jnp
from jax.experimental import pallas as pl
from jax.experimental.pallas import tpu as pltpu


def _flatten_kernel(x_ref, o_ref, *, H, W):
    # x_ref: (Kblk, H*W) lane-dense load; o_ref: (Kblk, W*H) lane-dense store.
    kb = x_ref.shape[0]
    x = x_ref[...].reshape(kb, H, W)
    o_ref[...] = jnp.swapaxes(x, 1, 2).reshape(kb, W * H)


def flatten_forward(x, *, block_bytes=2 * 1024 * 1024,
                    min_pallas_bytes=256 * 1024, force_pallas=False):
    """Equivalent of Flatten.forward: returns [B, C*W*H] with
    out[b, c*W*H + w*H + h] == x[b, c, h, w]."""
    B, C, H, W = x.shape
    K = B * C
    n = H * W
    itemsize = jnp.dtype(x.dtype).itemsize

    # Small-input fallback: kernel launch + pipeline overhead dwarfs the copy.
    if not force_pallas and x.size * itemsize < min_pallas_bytes:
        return jnp.transpose(x, (0, 1, 3, 2)).reshape(B, C * n)

    # Free, contiguous reshape to a lane-dense 2-D view.
    x2 = x.reshape(K, n)

    # Pick rows-per-block so each buffer is ~block_bytes; keep the second-minor
    # block dim either a multiple of 8 or equal to the full dim (K).
    per_row = n * itemsize
    kblk = max(1, block_bytes // per_row)
    if kblk >= K:
        kblk = K
    else:
        kblk = (kblk // 8) * 8
        if kblk == 0:
            kblk = min(8, K)

    grid_k = pl.cdiv(K, kblk)

    # VMEM budgeting: in + out, double-buffered, plus slack.  Only raise the
    # scoped limit when the blocks are actually big (keeps defaults otherwise).
    lane_padded_row = ((n + 127) // 128) * 128 * itemsize
    block_bytes_actual = kblk * lane_padded_row
    cp_kwargs = {"dimension_semantics": ("parallel",)}
    vmem_needed = 5 * block_bytes_actual
    if vmem_needed > 16 * 1024 * 1024:
        cp_kwargs["vmem_limit_bytes"] = int(min(64 * 1024 * 1024, vmem_needed))

    out2 = pl.pallas_call(
        functools.partial(_flatten_kernel, H=H, W=W),
        out_shape=jax.ShapeDtypeStruct((K, n), x.dtype),
        grid_spec=pltpu.PrefetchScalarGridSpec(
            num_scalar_prefetch=0,
            grid=(grid_k,),
            in_specs=[pl.BlockSpec((kblk, n), lambda k: (k, 0))],
            out_specs=pl.BlockSpec((kblk, n), lambda k: (k, 0)),
        ),
        compiler_params=pltpu.CompilerParams(**cp_kwargs),
    )(x2)

    # Pure metadata reshape (contiguous) back to [B, C*W*H].
    return out2.reshape(B, C * n)


if __name__ == "__main__":
    key = jax.random.PRNGKey(0)
    B, C, H, W = 2, 4, 16, 16
    x = jax.random.normal(key, (B, C, H, W), dtype=jnp.float32)

    # Exercise the Pallas kernel (single grid step, K == Kblk == 8).
    out = flatten_forward(x, force_pallas=True)
    jax.block_until_ready(out)
    ref = jnp.transpose(x, (0, 1, 3, 2)).reshape(B, -1)
    assert out.shape == (B, C * H * W)
    assert jnp.array_equal(out, ref)

    # Multi-step grid with a ragged last block (K=260, Kblk=64 -> 5 steps).
    B2, C2 = 2, 130
    x2 = jax.random.normal(jax.random.PRNGKey(1), (B2, C2, H, W), dtype=jnp.float32)
    out2 = flatten_forward(x2, force_pallas=True, block_bytes=64 * 1024)
    jax.block_until_ready(out2)
    ref2 = jnp.transpose(x2, (0, 1, 3, 2)).reshape(B2, -1)
    assert jnp.array_equal(out2, ref2)

    # Small-input fallback path (no Pallas) keeps identical semantics.
    out3 = flatten_forward(x)
    assert jnp.array_equal(out3, ref)

    print("KERNEL_OK")
</pallas_src>

<mosaic_0001>
module attributes {stable_mosaic.version = 11 : i64} {
  func.func @_flatten_kernel(%arg0: i32, %arg1: memref<8x256xf32, #tpu.memory_space<vmem>>, %arg2: memref<8x256xf32, #tpu.memory_space<vmem>>) attributes {dimension_semantics = [#tpu.dimension_semantics<parallel>], iteration_bounds = array<i64: 1>, scalar_prefetch = 0 : i64, scratch_operands = 0 : i64, tpu.core_type = #tpu.core_type<tc>, window_params = [{transform_indices = @transform_0, window_bounds = array<i64: 8, 256>}, {transform_indices = @transform_1, window_bounds = array<i64: 8, 256>}]} {
    %c0 = arith.constant 0 : index
    %c0_0 = arith.constant 0 : index
    %0 = vector.load %arg1[%c0, %c0_0] : memref<8x256xf32, #tpu.memory_space<vmem>>, vector<8x256xf32>
    %1 = vector.shape_cast %0 : vector<8x256xf32> to vector<8x16x16xf32>
    %2 = tpu.transpose %1, [0, 2, 1] : vector<8x16x16xf32> -> vector<8x16x16xf32>
    %3 = vector.shape_cast %2 : vector<8x16x16xf32> to vector<8x256xf32>
    %c0_1 = arith.constant 0 : index
    %c0_2 = arith.constant 0 : index
    %4 = vector.load %arg2[%c0_1, %c0_2] : memref<8x256xf32, #tpu.memory_space<vmem>>, vector<8x256xf32>
    tpu.vector_store %arg2[%c0_1, %c0_2], %3 {strides = array<i32>} : memref<8x256xf32, #tpu.memory_space<vmem>>, vector<8x256xf32>,
    return
  }
  func.func @transform_0(%arg0: i32) -> (i32, i32) {
    %c0_i32 = arith.constant 0 : i32
    %c0_i32_0 = arith.constant 0 : i32
    return %arg0, %c0_i32 : i32, i32
  }
  func.func @transform_1(%arg0: i32) -> (i32, i32) {
    %c0_i32 = arith.constant 0 : i32
    %c0_i32_0 = arith.constant 0 : i32
    return %arg0, %c0_i32 : i32, i32
  }
}

</mosaic_0001>

<llo_original>
// kernel: tpu_custom_call.1
$region0: #{tpu_custom_call.1}
  #allocation0 [shape = 'u32[]', space=smem, size = 0x4, offset = 0x4, fixed_abs, tag = 'smem constant byte address 0x4 - core index']
  #allocation1 [shape = 'u32[144,128]{1,0:T(1,128)}', space=vmem, size = 0x12000, scoped, tag = 'internal scratch']
  %s0 = inlined_call_operand.hbm [shape: f32[8,256], index: 0, kind: input, shape index: {}]
  %s1 = inlined_call_operand.hbm [shape: f32[8,256], index: 1, kind: output, shape index: {}]
  %s2 = sld [smem:[#allocation0]]
  $region18: #{tpu_custom_call.1} parent=0
    _
  %s4 = ssub.s32 1, %s2
  %s5 = scalar_select 0, %s4, %s2
  $region1: #{tpu_custom_call.1} parent=0
    #allocation2 [shape = 'u8[8192]{0}', space=vmem, size = 0x2000, scoped, tag = 'input window, operand 0, single buffered']
    #allocation3 [shape = 's32[1]{0}', space=sflag, size = 0x4, scoped, tag = 'scoped memory for tpu_custom_call.1']
    #allocation4 [shape = 's32[1]{0}', space=sflag, size = 0x4, scoped, tag = 'scoped memory for tpu_custom_call.1']
    #allocation5 [shape = 'u8[8192]{0}', space=vmem, size = 0x2000, scoped, tag = 'output window, operand 0, single buffered']
    %6 = vsyncpa [#allocation3], 0
    %7 = vsyncpa [#allocation4], 0
    // Predicated region
    $region2: #{tpu_custom_call.1} parent=1 // pred_check
      _
    $region3: #{tpu_custom_call.1} parent=1 // pred_check_branch
      %9 = sbr.rel (0) target = $region5
    $region4: #{tpu_custom_call.1} parent=1 // pred_region
      %s11 = ssub.s32 256, 256
      %12 = vsyncadd [#allocation3], %s11
      %s14 = sshll.u32 [#allocation2], 4
      %s15 = int_to_ptr.vmem [resolvable:$true] %s14
      %17 = dma.hbm_to_vmem [thread:$0]  %s0, 256, %s15, [#allocation3]
    $region5: #{tpu_custom_call.1} parent=1 // pred_fallthru
      _
    // Predicated region
    $region6: #{tpu_custom_call.1} parent=1 // pred_check
      _
    $region7: #{tpu_custom_call.1} parent=1 // pred_check_branch
      %19 = sbr.rel (0) target = $region9
    $region8: #{tpu_custom_call.1} parent=1 // pred_region
      %20 = dma.done [#allocation3], 256
    $region9: #{tpu_custom_call.1} parent=1 // pred_fallthru
      _
    %v21 = vld [vmem:[#allocation2] sm:$0xff]
    %v22 = vld [vmem:[#allocation2 + $0x8] sm:$0xff]
    %24 = vrot.lane.b32.xlu0 %v21, 112
    %v25 = vpop.permute.xlu0 %24
    %27 = vrot.lane.b32.xlu0 %v21, 96
    %v28 = vpop.permute.xlu0 %27
    %30 = vrot.lane.b32.xlu0 %v21, 80
    %v31 = vpop.permute.xlu0 %30
    %33 = vrot.lane.b32.xlu0 %v21, 64
    %v34 = vpop.permute.xlu0 %33
    %36 = vrot.lane.b32.xlu0 %v21, 48
    %v37 = vpop.permute.xlu0 %36
    %39 = vrot.lane.b32.xlu0 %v21, 32
    %v40 = vpop.permute.xlu0 %39
    %42 = vrot.lane.b32.xlu0 %v21, 16
    %v43 = vpop.permute.xlu0 %42
    %46 = vrot.lane.b32.xlu0 %v22, 112
    %v47 = vpop.permute.xlu0 %46
    %49 = vrot.lane.b32.xlu0 %v22, 96
    %v50 = vpop.permute.xlu0 %49
    %52 = vrot.lane.b32.xlu0 %v22, 80
    %v53 = vpop.permute.xlu0 %52
    %55 = vrot.lane.b32.xlu0 %v22, 64
    %v56 = vpop.permute.xlu0 %55
    %58 = vrot.lane.b32.xlu0 %v22, 48
    %v59 = vpop.permute.xlu0 %58
    %61 = vrot.lane.b32.xlu0 %v22, 32
    %v62 = vpop.permute.xlu0 %61
    %64 = vrot.lane.b32.xlu0 %v22, 16
    %v65 = vpop.permute.xlu0 %64
    %v67 = vcombine.low %v21, %v28
    %v68 = vcombine.high %v21, %v28
    %v70 = vunpack.c.l.s4 1983009808
    %v71 = vunpack.c.0.s8 %v70
    %v72 = vlaneseq
    %v73 = vshrl.u32 %v72, 7
    %v74 = vsub.s32 %v71, %v73
    %v75 = vrot.slane %v67, %v74
    %v77 = vunpack.c.l.s4 1983009808
    %v78 = vunpack.c.0.s8 %v77
    %v79 = vlaneseq
    %v80 = vshrl.u32 %v79, 7
    %v81 = vsub.s32 %v78, %v80
    %v82 = vrot.slane %v68, %v81
    %v83 = vcombine.low %v25, %v31
    %v84 = vcombine.high %v25, %v31
    %v86 = vunpack.c.l.s4 1983009808
    %v87 = vunpack.c.0.s8 %v86
    %v88 = vlaneseq
    %v89 = vshrl.u32 %v88, 7
    %v90 = vsub.s32 %v87, %v89
    %v91 = vrot.slane %v83, %v90
    %v93 = vunpack.c.l.s4 1983009808
    %v94 = vunpack.c.0.s8 %v93
    %v95 = vlaneseq
    %v96 = vshrl.u32 %v95, 7
    %v97 = vsub.s32 %v94, %v96
    %v98 = vrot.slane %v84, %v97
    %v99 = vcombine.low %v34, %v40
    %v100 = vcombine.high %v34, %v40
    %v102 = vunpack.c.l.s4 1983009808
    %v103 = vunpack.c.0.s8 %v102
    %v104 = vlaneseq
    %v105 = vshrl.u32 %v104, 7
    %v106 = vsub.s32 %v103, %v105
    %v107 = vrot.slane %v99, %v106
    %v109 = vunpack.c.l.s4 1983009808
    %v110 = vunpack.c.0.s8 %v109
    %v111 = vlaneseq
    %v112 = vshrl.u32 %v111, 7
    %v113 = vsub.s32 %v110, %v112
    %v114 = vrot.slane %v100, %v113
    %v115 = vcombine.low %v37, %v43
    %v116 = vcombine.high %v37, %v43
    %v118 = vunpack.c.l.s4 1983009808
    %v119 = vunpack.c.0.s8 %v118
    %v120 = vlaneseq
    %v121 = vshrl.u32 %v120, 7
    %v122 = vsub.s32 %v119, %v121
    %v123 = vrot.slane %v115, %v122
    %v125 = vunpack.c.l.s4 1983009808
    %v126 = vunpack.c.0.s8 %v125
    %v127 = vlaneseq
    %v128 = vshrl.u32 %v127, 7
    %v129 = vsub.s32 %v126, %v128
    %v130 = vrot.slane %v116, %v129
    %v131 = vcombine.low %v75, %v91
    %v132 = vcombine.high %v75, %v91
    %v134 = vunpack.c.l.s4 1934713408
    %v135 = vunpack.c.0.s8 %v134
    %v136 = vlaneseq
    %v137 = vshrl.u32 %v136, 7
    %v138 = vsub.s32 %v135, %v137
    %v139 = vrot.slane %v131, %v138
    %v141 = vunpack.c.l.s4 1934713408
    %v142 = vunpack.c.0.s8 %v141
    %v143 = vlaneseq
    %v144 = vshrl.u32 %v143, 7
    %v145 = vsub.s32 %v142, %v144
    %v146 = vrot.slane %v132, %v145
    %v147 = vcombine.low %v82, %v98
    %v148 = vcombine.high %v82, %v98
    %v150 = vunpack.c.l.s4 1934713408
    %v151 = vunpack.c.0.s8 %v150
    %v152 = vlaneseq
    %v153 = vshrl.u32 %v152, 7
    %v154 = vsub.s32 %v151, %v153
    %v155 = vrot.slane %v147, %v154
    %v157 = vunpack.c.l.s4 1934713408
    %v158 = vunpack.c.0.s8 %v157
    %v159 = vlaneseq
    %v160 = vshrl.u32 %v159, 7
    %v161 = vsub.s32 %v158, %v160
    %v162 = vrot.slane %v148, %v161
    %v163 = vcombine.low %v107, %v123
    %v164 = vcombine.high %v107, %v123
    %v166 = vunpack.c.l.s4 1934713408
    %v167 = vunpack.c.0.s8 %v166
    %v168 = vlaneseq
    %v169 = vshrl.u32 %v168, 7
    %v170 = vsub.s32 %v167, %v169
    %v171 = vrot.slane %v163, %v170
    %v173 = vunpack.c.l.s4 1934713408
    %v174 = vunpack.c.0.s8 %v173
    %v175 = vlaneseq
    %v176 = vshrl.u32 %v175, 7
    %v177 = vsub.s32 %v174, %v176
    %v178 = vrot.slane %v164, %v177
    %v179 = vcombine.low %v114, %v130
    %v180 = vcombine.high %v114, %v130
    %v182 = vunpack.c.l.s4 1934713408
    %v183 = vunpack.c.0.s8 %v182
    %v184 = vlaneseq
    %v185 = vshrl.u32 %v184, 7
    %v186 = vsub.s32 %v183, %v185
    %v187 = vrot.slane %v179, %v186
    %v189 = vunpack.c.l.s4 1934713408
    %v190 = vunpack.c.0.s8 %v189
    %v191 = vlaneseq
    %v192 = vshrl.u32 %v191, 7
    %v193 = vsub.s32 %v190, %v192
    %v194 = vrot.slane %v180, %v193
    %v195 = vcombine.low %v139, %v171
    %v196 = vcombine.high %v139, %v171
    %v197 = vcombine.low %v146, %v178
    %v198 = vcombine.high %v146, %v178
    %v199 = vcombine.low %v155, %v187
    %v200 = vcombine.high %v155, %v187
    %v201 = vcombine.low %v162, %v194
    %v202 = vcombine.high %v162, %v194
    %v203 = vcombine.low %v22, %v50
    %v204 = vcombine.high %v22, %v50
    %v206 = vunpack.c.l.s4 1983009808
    %v207 = vunpack.c.0.s8 %v206
    %v208 = vlaneseq
    %v209 = vshrl.u32 %v208, 7
    %v210 = vsub.s32 %v207, %v209
    %v211 = vrot.slane %v203, %v210
    %v213 = vunpack.c.l.s4 1983009808
    %v214 = vunpack.c.0.s8 %v213
    %v215 = vlaneseq
    %v216 = vshrl.u32 %v215, 7
    %v217 = vsub.s32 %v214, %v216
    %v218 = vrot.slane %v204, %v217
    %v219 = vcombine.low %v47, %v53
    %v220 = vcombine.high %v47, %v53
    %v222 = vunpack.c.l.s4 1983009808
    %v223 = vunpack.c.0.s8 %v222
    %v224 = vlaneseq
    %v225 = vshrl.u32 %v224, 7
    %v226 = vsub.s32 %v223, %v225
    %v227 = vrot.slane %v219, %v226
    %v229 = vunpack.c.l.s4 1983009808
    %v230 = vunpack.c.0.s8 %v229
    %v231 = vlaneseq
    %v232 = vshrl.u32 %v231, 7
    %v233 = vsub.s32 %v230, %v232
    %v234 = vrot.slane %v220, %v233
    %v235 = vcombine.low %v56, %v62
    %v236 = vcombine.high %v56, %v62
    %v238 = vunpack.c.l.s4 1983009808
    %v239 = vunpack.c.0.s8 %v238
    %v240 = vlaneseq
    %v241 = vshrl.u32 %v240, 7
    %v242 = vsub.s32 %v239, %v241
    %v243 = vrot.slane %v235, %v242
    %v245 = vunpack.c.l.s4 1983009808
    %v246 = vunpack.c.0.s8 %v245
    %v247 = vlaneseq
    %v248 = vshrl.u32 %v247, 7
    %v249 = vsub.s32 %v246, %v248
    %v250 = vrot.slane %v236, %v249
    %v251 = vcombine.low %v59, %v65
    %v252 = vcombine.high %v59, %v65
    %v254 = vunpack.c.l.s4 1983009808
    %v255 = vunpack.c.0.s8 %v254
    %v256 = vlaneseq
    %v257 = vshrl.u32 %v256, 7
    %v258 = vsub.s32 %v255, %v257
    %v259 = vrot.slane %v251, %v258
    %v261 = vunpack.c.l.s4 1983009808
    %v262 = vunpack.c.0.s8 %v261
    %v263 = vlaneseq
    %v264 = vshrl.u32 %v263, 7
    %v265 = vsub.s32 %v262, %v264
    %v266 = vrot.slane %v252, %v265
    %v267 = vcombine.low %v211, %v227
    %v268 = vcombine.high %v211, %v227
    %v270 = vunpack.c.l.s4 1934713408
    %v271 = vunpack.c.0.s8 %v270
    %v272 = vlaneseq
    %v273 = vshrl.u32 %v272, 7
    %v274 = vsub.s32 %v271, %v273
    %v275 = vrot.slane %v267, %v274
    %v277 = vunpack.c.l.s4 1934713408
    %v278 = vunpack.c.0.s8 %v277
    %v279 = vlaneseq
    %v280 = vshrl.u32 %v279, 7
    %v281 = vsub.s32 %v278, %v280
    %v282 = vrot.slane %v268, %v281
    %v283 = vcombine.low %v218, %v234
    %v284 = vcombine.high %v218, %v234
    %v286 = vunpack.c.l.s4 1934713408
    %v287 = vunpack.c.0.s8 %v286
    %v288 = vlaneseq
    %v289 = vshrl.u32 %v288, 7
    %v290 = vsub.s32 %v287, %v289
    %v291 = vrot.slane %v283, %v290
    %v293 = vunpack.c.l.s4 1934713408
    %v294 = vunpack.c.0.s8 %v293
    %v295 = vlaneseq
    %v296 = vshrl.u32 %v295, 7
    %v297 = vsub.s32 %v294, %v296
    %v298 = vrot.slane %v284, %v297
    %v299 = vcombine.low %v243, %v259
    %v300 = vcombine.high %v243, %v259
    %v302 = vunpack.c.l.s4 1934713408
    %v303 = vunpack.c.0.s8 %v302
    %v304 = vlaneseq
    %v305 = vshrl.u32 %v304, 7
    %v306 = vsub.s32 %v303, %v305
    %v307 = vrot.slane %v299, %v306
    %v309 = vunpack.c.l.s4 1934713408
    %v310 = vunpack.c.0.s8 %v309
    %v311 = vlaneseq
    %v312 = vshrl.u32 %v311, 7
    %v313 = vsub.s32 %v310, %v312
    %v314 = vrot.slane %v300, %v313
    %v315 = vcombine.low %v250, %v266
    %v316 = vcombine.high %v250, %v266
    %v318 = vunpack.c.l.s4 1934713408
    %v319 = vunpack.c.0.s8 %v318
    %v320 = vlaneseq
    %v321 = vshrl.u32 %v320, 7
    %v322 = vsub.s32 %v319, %v321
    %v323 = vrot.slane %v315, %v322
    %v325 = vunpack.c.l.s4 1934713408
    %v326 = vunpack.c.0.s8 %v325
    %v327 = vlaneseq
    %v328 = vshrl.u32 %v327, 7
    %v329 = vsub.s32 %v326, %v328
    %v330 = vrot.slane %v316, %v329
    %v331 = vcombine.low %v275, %v307
    %v332 = vcombine.high %v275, %v307
    %v333 = vcombine.low %v282, %v314
    %v334 = vcombine.high %v282, %v314
    %v335 = vcombine.low %v291, %v323
    %v336 = vcombine.high %v291, %v323
    %v337 = vcombine.low %v298, %v330
    %v338 = vcombine.high %v298, %v330
    %339 = vxpose.xlu0.b32.start [1/16] %v195, 128
    %340 = vxpose.xlu0.b32.cont [2/16] %v331, 128
    %341 = vxpose.xlu0.b32.cont [3/16] 0.0, 128
    %342 = vxpose.xlu0.b32.cont [4/16] 0.0, 128
    %343 = vxpose.xlu0.b32.cont [5/16] 0.0, 128
    %344 = vxpose.xlu0.b32.cont [6/16] 0.0, 128
    %345 = vxpose.xlu0.b32.cont [7/16] 0.0, 128
    %346 = vxpose.xlu0.b32.cont [8/16] 0.0, 128
    %347 = vxpose.xlu0.b32.cont [9/16] 0.0, 128
    %348 = vxpose.xlu0.b32.cont [10/16] 0.0, 128
    %349 = vxpose.xlu0.b32.cont [11/16] 0.0, 128
    %350 = vxpose.xlu0.b32.cont [12/16] 0.0, 128
    %351 = vxpose.xlu0.b32.cont [13/16] 0.0, 128
    %352 = vxpose.xlu0.b32.cont [14/16] 0.0, 128
    %353 = vxpose.xlu0.b32.cont [15/16] 0.0, 128
    %354 = vxpose.xlu0.b32.end [16/16] 0.0, 128
    %v355 = vpop.trf.xlu0
    %v356 = vpop.trf.xlu0
    %v357 = vpop.trf.xlu0
    %v358 = vpop.trf.xlu0
    %v359 = vpop.trf.xlu0
    %v360 = vpop.trf.xlu0
    %v361 = vpop.trf.xlu0
    %v362 = vpop.trf.xlu0
    %v363 = vpop.trf.xlu0
    %v364 = vpop.trf.xlu0
    %v365 = vpop.trf.xlu0
    %v366 = vpop.trf.xlu0
    %v367 = vpop.trf.xlu0
    %v368 = vpop.trf.xlu0
    %v369 = vpop.trf.xlu0
    %v370 = vpop.trf.xlu0
    %371 = vxpose.xlu0.b32.start [1/16] %v196, 128
    %372 = vxpose.xlu0.b32.cont [2/16] %v332, 128
    %373 = vxpose.xlu0.b32.cont [3/16] 0.0, 128
    %374 = vxpose.xlu0.b32.cont [4/16] 0.0, 128
    %375 = vxpose.xlu0.b32.cont [5/16] 0.0, 128
    %376 = vxpose.xlu0.b32.cont [6/16] 0.0, 128
    %377 = vxpose.xlu0.b32.cont [7/16] 0.0, 128
    %378 = vxpose.xlu0.b32.cont [8/16] 0.0, 128
    %379 = vxpose.xlu0.b32.cont [9/16] 0.0, 128
    %380 = vxpose.xlu0.b32.cont [10/16] 0.0, 128
    %381 = vxpose.xlu0.b32.cont [11/16] 0.0, 128
    %382 = vxpose.xlu0.b32.cont [12/16] 0.0, 128
    %383 = vxpose.xlu0.b32.cont [13/16] 0.0, 128
    %384 = vxpose.xlu0.b32.cont [14/16] 0.0, 128
    %385 = vxpose.xlu0.b32.cont [15/16] 0.0, 128
    %386 = vxpose.xlu0.b32.end [16/16] 0.0, 128
    %v387 = vpop.trf.xlu0
    %v388 = vpop.trf.xlu0
    %v389 = vpop.trf.xlu0
    %v390 = vpop.trf.xlu0
    %v391 = vpop.trf.xlu0
    %v392 = vpop.trf.xlu0
    %v393 = vpop.trf.xlu0
    %v394 = vpop.trf.xlu0
    %v395 = vpop.trf.xlu0
    %v396 = vpop.trf.xlu0
    %v397 = vpop.trf.xlu0
    %v398 = vpop.trf.xlu0
    %v399 = vpop.trf.xlu0
    %v400 = vpop.trf.xlu0
    %v401 = vpop.trf.xlu0
    %v402 = vpop.trf.xlu0
    %403 = vxpose.xlu0.b32.start [1/16] %v197, 128
    %404 = vxpose.xlu0.b32.cont [2/16] %v333, 128
    %405 = vxpose.xlu0.b32.cont [3/16] 0.0, 128
    %406 = vxpose.xlu0.b32.cont [4/16] 0.0, 128
    %407 = vxpose.xlu0.b32.cont [5/16] 0.0, 128
    %408 = vxpose.xlu0.b32.cont [6/16] 0.0, 128
    %409 = vxpose.xlu0.b32.cont [7/16] 0.0, 128
    %410 = vxpose.xlu0.b32.cont [8/16] 0.0, 128
    %411 = vxpose.xlu0.b32.cont [9/16] 0.0, 128
    %412 = vxpose.xlu0.b32.cont [10/16] 0.0, 128
    %413 = vxpose.xlu0.b32.cont [11/16] 0.0, 128
    %414 = vxpose.xlu0.b32.cont [12/16] 0.0, 128
    %415 = vxpose.xlu0.b32.cont [13/16] 0.0, 128
    %416 = vxpose.xlu0.b32.cont [14/16] 0.0, 128
    %417 = vxpose.xlu0.b32.cont [15/16] 0.0, 128
    %418 = vxpose.xlu0.b32.end [16/16] 0.0, 128
    %v419 = vpop.trf.xlu0
    %v420 = vpop.trf.xlu0
    %v421 = vpop.trf.xlu0
    %v422 = vpop.trf.xlu0
    %v423 = vpop.trf.xlu0
    %v424 = vpop.trf.xlu0
    %v425 = vpop.trf.xlu0
    %v426 = vpop.trf.xlu0
    %v427 = vpop.trf.xlu0
    %v428 = vpop.trf.xlu0
    %v429 = vpop.trf.xlu0
    %v430 = vpop.trf.xlu0
    %v431 = vpop.trf.xlu0
    %v432 = vpop.trf.xlu0
    %v433 = vpop.trf.xlu0
    %v434 = vpop.trf.xlu0
    %435 = vxpose.xlu0.b32.start [1/16] %v198, 128
    %436 = vxpose.xlu0.b32.cont [2/16] %v334, 128
    %437 = vxpose.xlu0.b32.cont [3/16] 0.0, 128
    %438 = vxpose.xlu0.b32.cont [4/16] 0.0, 128
    %439 = vxpose.xlu0.b32.cont [5/16] 0.0, 128
    %440 = vxpose.xlu0.b32.cont [6/16] 0.0, 128
    %441 = vxpose.xlu0.b32.cont [7/16] 0.0, 128
    %442 = vxpose.xlu0.b32.cont [8/16] 0.0, 128
    %443 = vxpose.xlu0.b32.cont [9/16] 0.0, 128
    %444 = vxpose.xlu0.b32.cont [10/16] 0.0, 128
    %445 = vxpose.xlu0.b32.cont [11/16] 0.0, 128
    %446 = vxpose.xlu0.b32.cont [12/16] 0.0, 128
    %447 = vxpose.xlu0.b32.cont [13/16] 0.0, 128
    %448 = vxpose.xlu0.b32.cont [14/16] 0.0, 128
    %449 = vxpose.xlu0.b32.cont [15/16] 0.0, 128
    %450 = vxpose.xlu0.b32.end [16/16] 0.0, 128
    %v451 = vpop.trf.xlu0
    %v452 = vpop.trf.xlu0
    %v453 = vpop.trf.xlu0
    %v454 = vpop.trf.xlu0
    %v455 = vpop.trf.xlu0
    %v456 = vpop.trf.xlu0
    %v457 = vpop.trf.xlu0
    %v458 = vpop.trf.xlu0
    %v459 = vpop.trf.xlu0
    %v460 = vpop.trf.xlu0
    %v461 = vpop.trf.xlu0
    %v462 = vpop.trf.xlu0
    %v463 = vpop.trf.xlu0
    %v464 = vpop.trf.xlu0
    %v465 = vpop.trf.xlu0
    %v466 = vpop.trf.xlu0
    %467 = vxpose.xlu0.b32.start [1/16] %v199, 128
    %468 = vxpose.xlu0.b32.cont [2/16] %v335, 128
    %469 = vxpose.xlu0.b32.cont [3/16] 0.0, 128
    %470 = vxpose.xlu0.b32.cont [4/16] 0.0, 128
    %471 = vxpose.xlu0.b32.cont [5/16] 0.0, 128
    %472 = vxpose.xlu0.b32.cont [6/16] 0.0, 128
    %473 = vxpose.xlu0.b32.cont [7/16] 0.0, 128
    %474 = vxpose.xlu0.b32.cont [8/16] 0.0, 128
    %475 = vxpose.xlu0.b32.cont [9/16] 0.0, 128
    %476 = vxpose.xlu0.b32.cont [10/16] 0.0, 128
    %477 = vxpose.xlu0.b32.cont [11/16] 0.0, 128
    %478 = vxpose.xlu0.b32.cont [12/16] 0.0, 128
    %479 = vxpose.xlu0.b32.cont [13/16] 0.0, 128
    %480 = vxpose.xlu0.b32.cont [14/16] 0.0, 128
    %481 = vxpose.xlu0.b32.cont [15/16] 0.0, 128
    %482 = vxpose.xlu0.b32.end [16/16] 0.0, 128
    %v483 = vpop.trf.xlu0
    %v484 = vpop.trf.xlu0
    %v485 = vpop.trf.xlu0
    %v486 = vpop.trf.xlu0
    %v487 = vpop.trf.xlu0
    %v488 = vpop.trf.xlu0
    %v489 = vpop.trf.xlu0
    %v490 = vpop.trf.xlu0
    %v491 = vpop.trf.xlu0
    %v492 = vpop.trf.xlu0
    %v493 = vpop.trf.xlu0
    %v494 = vpop.trf.xlu0
    %v495 = vpop.trf.xlu0
    %v496 = vpop.trf.xlu0
    %v497 = vpop.trf.xlu0
    %v498 = vpop.trf.xlu0
    %499 = vxpose.xlu0.b32.start [1/16] %v200, 128
    %500 = vxpose.xlu0.b32.cont [2/16] %v336, 128
    %501 = vxpose.xlu0.b32.cont [3/16] 0.0, 128
    %502 = vxpose.xlu0.b32.cont [4/16] 0.0, 128
    %503 = vxpose.xlu0.b32.cont [5/16] 0.0, 128
    %504 = vxpose.xlu0.b32.cont [6/16] 0.0, 128
    %505 = vxpose.xlu0.b32.cont [7/16] 0.0, 128
    %506 = vxpose.xlu0.b32.cont [8/16] 0.0, 128
    %507 = vxpose.xlu0.b32.cont [9/16] 0.0, 128
    %508 = vxpose.xlu0.b32.cont [10/16] 0.0, 128
    %509 = vxpose.xlu0.b32.cont [11/16] 0.0, 128
    %510 = vxpose.xlu0.b32.cont [12/16] 0.0, 128
    %511 = vxpose.xlu0.b32.cont [13/16] 0.0, 128
    %512 = vxpose.xlu0.b32.cont [14/16] 0.0, 128
    %513 = vxpose.xlu0.b32.cont [15/16] 0.0, 128
    %514 = vxpose.xlu0.b32.end [16/16] 0.0, 128
    %v515 = vpop.trf.xlu0
    %v516 = vpop.trf.xlu0
    %v517 = vpop.trf.xlu0
    %v518 = vpop.trf.xlu0
    %v519 = vpop.trf.xlu0
    %v520 = vpop.trf.xlu0
    %v521 = vpop.trf.xlu0
    %v522 = vpop.trf.xlu0
    %v523 = vpop.trf.xlu0
    %v524 = vpop.trf.xlu0
    %v525 = vpop.trf.xlu0
    %v526 = vpop.trf.xlu0
    %v527 = vpop.trf.xlu0
    %v528 = vpop.trf.xlu0
    %v529 = vpop.trf.xlu0
    %v530 = vpop.trf.xlu0
    %531 = vxpose.xlu0.b32.start [1/16] %v201, 128
    %532 = vxpose.xlu0.b32.cont [2/16] %v337, 128
    %533 = vxpose.xlu0.b32.cont [3/16] 0.0, 128
    %534 = vxpose.xlu0.b32.cont [4/16] 0.0, 128
    %535 = vxpose.xlu0.b32.cont [5/16] 0.0, 128
    %536 = vxpose.xlu0.b32.cont [6/16] 0.0, 128
    %537 = vxpose.xlu0.b32.cont [7/16] 0.0, 128
    %538 = vxpose.xlu0.b32.cont [8/16] 0.0, 128
    %539 = vxpose.xlu0.b32.cont [9/16] 0.0, 128
    %540 = vxpose.xlu0.b32.cont [10/16] 0.0, 128
    %541 = vxpose.xlu0.b32.cont [11/16] 0.0, 128
    %542 = vxpose.xlu0.b32.cont [12/16] 0.0, 128
    %543 = vxpose.xlu0.b32.cont [13/16] 0.0, 128
    %544 = vxpose.xlu0.b32.cont [14/16] 0.0, 128
    %545 = vxpose.xlu0.b32.cont [15/16] 0.0, 128
    %546 = vxpose.xlu0.b32.end [16/16] 0.0, 128
    %v547 = vpop.trf.xlu0
    %v548 = vpop.trf.xlu0
    %v549 = vpop.trf.xlu0
    %v550 = vpop.trf.xlu0
    %v551 = vpop.trf.xlu0
    %v552 = vpop.trf.xlu0
    %v553 = vpop.trf.xlu0
    %v554 = vpop.trf.xlu0
    %v555 = vpop.trf.xlu0
    %v556 = vpop.trf.xlu0
    %v557 = vpop.trf.xlu0
    %v558 = vpop.trf.xlu0
    %v559 = vpop.trf.xlu0
    %v560 = vpop.trf.xlu0
    %v561 = vpop.trf.xlu0
    %v562 = vpop.trf.xlu0
    %563 = vxpose.xlu0.b32.start [1/16] %v202, 128
    %564 = vxpose.xlu0.b32.cont [2/16] %v338, 128
    %565 = vxpose.xlu0.b32.cont [3/16] 0.0, 128
    %566 = vxpose.xlu0.b32.cont [4/16] 0.0, 128
    %567 = vxpose.xlu0.b32.cont [5/16] 0.0, 128
    %568 = vxpose.xlu0.b32.cont [6/16] 0.0, 128
    %569 = vxpose.xlu0.b32.cont [7/16] 0.0, 128
    %570 = vxpose.xlu0.b32.cont [8/16] 0.0, 128
    %571 = vxpose.xlu0.b32.cont [9/16] 0.0, 128
    %572 = vxpose.xlu0.b32.cont [10/16] 0.0, 128
    %573 = vxpose.xlu0.b32.cont [11/16] 0.0, 128
    %574 = vxpose.xlu0.b32.cont [12/16] 0.0, 128
    %575 = vxpose.xlu0.b32.cont [13/16] 0.0, 128
    %576 = vxpose.xlu0.b32.cont [14/16] 0.0, 128
    %577 = vxpose.xlu0.b32.cont [15/16] 0.0, 128
    %578 = vxpose.xlu0.b32.end [16/16] 0.0, 128
    %v579 = vpop.trf.xlu0
    %v580 = vpop.trf.xlu0
    %v581 = vpop.trf.xlu0
    %v582 = vpop.trf.xlu0
    %v583 = vpop.trf.xlu0
    %v584 = vpop.trf.xlu0
    %v585 = vpop.trf.xlu0
    %v586 = vpop.trf.xlu0
    %v587 = vpop.trf.xlu0
    %v588 = vpop.trf.xlu0
    %v589 = vpop.trf.xlu0
    %v590 = vpop.trf.xlu0
    %v591 = vpop.trf.xlu0
    %v592 = vpop.trf.xlu0
    %v593 = vpop.trf.xlu0
    %v594 = vpop.trf.xlu0
    %v595 = vcombine.low %v355, %v419
    %v596 = vcombine.high %v355, %v419
    %v598 = vunpack.c.l.s4 1983009808
    %v599 = vunpack.c.0.s8 %v598
    %v600 = vlaneseq
    %v601 = vshrl.u32 %v600, 7
    %v602 = vsub.s32 %v599, %v601
    %v603 = vrot.slane %v595, %v602
    %v605 = vunpack.c.l.s4 1983009808
    %v606 = vunpack.c.0.s8 %v605
    %v607 = vlaneseq
    %v608 = vshrl.u32 %v607, 7
    %v609 = vsub.s32 %v606, %v608
    %v610 = vrot.slane %v596, %v609
    %v611 = vcombine.low %v387, %v451
    %v612 = vcombine.high %v387, %v451
    %v614 = vunpack.c.l.s4 1983009808
    %v615 = vunpack.c.0.s8 %v614
    %v616 = vlaneseq
    %v617 = vshrl.u32 %v616, 7
    %v618 = vsub.s32 %v615, %v617
    %v619 = vrot.slane %v611, %v618
    %v621 = vunpack.c.l.s4 1983009808
    %v622 = vunpack.c.0.s8 %v621
    %v623 = vlaneseq
    %v624 = vshrl.u32 %v623, 7
    %v625 = vsub.s32 %v622, %v624
    %v626 = vrot.slane %v612, %v625
    %v627 = vcombine.low %v483, %v547
    %v628 = vcombine.high %v483, %v547
    %v630 = vunpack.c.l.s4 1983009808
    %v631 = vunpack.c.0.s8 %v630
    %v632 = vlaneseq
    %v633 = vshrl.u32 %v632, 7
    %v634 = vsub.s32 %v631, %v633
    %v635 = vrot.slane %v627, %v634
    %v637 = vunpack.c.l.s4 1983009808
    %v638 = vunpack.c.0.s8 %v637
    %v639 = vlaneseq
    %v640 = vshrl.u32 %v639, 7
    %v641 = vsub.s32 %v638, %v640
    %v642 = vrot.slane %v628, %v641
    %v643 = vcombine.low %v515, %v579
    %v644 = vcombine.high %v515, %v579
    %v646 = vunpack.c.l.s4 1983009808
    %v647 = vunpack.c.0.s8 %v646
    %v648 = vlaneseq
    %v649 = vshrl.u32 %v648, 7
    %v650 = vsub.s32 %v647, %v649
    %v651 = vrot.slane %v643, %v650
    %v653 = vunpack.c.l.s4 1983009808
    %v654 = vunpack.c.0.s8 %v653
    %v655 = vlaneseq
    %v656 = vshrl.u32 %v655, 7
    %v657 = vsub.s32 %v654, %v656
    %v658 = vrot.slane %v644, %v657
    %v659 = vcombine.low %v603, %v619
    %v660 = vcombine.high %v603, %v619
    %v662 = vunpack.c.l.s4 1934713408
    %v663 = vunpack.c.0.s8 %v662
    %v664 = vlaneseq
    %v665 = vshrl.u32 %v664, 7
    %v666 = vsub.s32 %v663, %v665
    %v667 = vrot.slane %v659, %v666
    %v669 = vunpack.c.l.s4 1934713408
    %v670 = vunpack.c.0.s8 %v669
    %v671 = vlaneseq
    %v672 = vshrl.u32 %v671, 7
    %v673 = vsub.s32 %v670, %v672
    %v674 = vrot.slane %v660, %v673
    %v675 = vcombine.low %v610, %v626
    %v676 = vcombine.high %v610, %v626
    %v678 = vunpack.c.l.s4 1934713408
    %v679 = vunpack.c.0.s8 %v678
    %v680 = vlaneseq
    %v681 = vshrl.u32 %v680, 7
    %v682 = vsub.s32 %v679, %v681
    %v683 = vrot.slane %v675, %v682
    %v685 = vunpack.c.l.s4 1934713408
    %v686 = vunpack.c.0.s8 %v685
    %v687 = vlaneseq
    %v688 = vshrl.u32 %v687, 7
    %v689 = vsub.s32 %v686, %v688
    %v690 = vrot.slane %v676, %v689
    %v691 = vcombine.low %v635, %v651
    %v692 = vcombine.high %v635, %v651
    %v694 = vunpack.c.l.s4 1934713408
    %v695 = vunpack.c.0.s8 %v694
    %v696 = vlaneseq
    %v697 = vshrl.u32 %v696, 7
    %v698 = vsub.s32 %v695, %v697
    %v699 = vrot.slane %v691, %v698
    %v701 = vunpack.c.l.s4 1934713408
    %v702 = vunpack.c.0.s8 %v701
    %v703 = vlaneseq
    %v704 = vshrl.u32 %v703, 7
    %v705 = vsub.s32 %v702, %v704
    %v706 = vrot.slane %v692, %v705
    %v707 = vcombine.low %v642, %v658
    %v708 = vcombine.high %v642, %v658
    %v710 = vunpack.c.l.s4 1934713408
    %v711 = vunpack.c.0.s8 %v710
    %v712 = vlaneseq
    %v713 = vshrl.u32 %v712, 7
    %v714 = vsub.s32 %v711, %v713
    %v715 = vrot.slane %v707, %v714
    %v717 = vunpack.c.l.s4 1934713408
    %v718 = vunpack.c.0.s8 %v717
    %v719 = vlaneseq
    %v720 = vshrl.u32 %v719, 7
    %v721 = vsub.s32 %v718, %v720
    %v722 = vrot.slane %v708, %v721
    %v723 = vcombine.low %v667, %v699
    %v724 = vcombine.high %v667, %v699
    %v725 = vcombine.low %v674, %v706
    %v726 = vcombine.high %v674, %v706
    %v727 = vcombine.low %v683, %v715
    %v728 = vcombine.high %v683, %v715
    %v729 = vcombine.low %v690, %v722
    %v730 = vcombine.high %v690, %v722
    %v731 = vcombine.low %v356, %v420
    %v732 = vcombine.high %v356, %v420
    %v734 = vunpack.c.l.s4 1983009808
    %v735 = vunpack.c.0.s8 %v734
    %v736 = vlaneseq
    %v737 = vshrl.u32 %v736, 7
    %v738 = vsub.s32 %v735, %v737
    %v739 = vrot.slane %v731, %v738
    %v741 = vunpack.c.l.s4 1983009808
    %v742 = vunpack.c.0.s8 %v741
    %v743 = vlaneseq
    %v744 = vshrl.u32 %v743, 7
    %v745 = vsub.s32 %v742, %v744
    %v746 = vrot.slane %v732, %v745
    %v747 = vcombine.low %v388, %v452
    %v748 = vcombine.high %v388, %v452
    %v750 = vunpack.c.l.s4 1983009808
    %v751 = vunpack.c.0.s8 %v750
    %v752 = vlaneseq
    %v753 = vshrl.u32 %v752, 7
    %v754 = vsub.s32 %v751, %v753
    %v755 = vrot.slane %v747, %v754
    %v757 = vunpack.c.l.s4 1983009808
    %v758 = vunpack.c.0.s8 %v757
    %v759 = vlaneseq
    %v760 = vshrl.u32 %v759, 7
    %v761 = vsub.s32 %v758, %v760
    %v762 = vrot.slane %v748, %v761
    %v763 = vcombine.low %v484, %v548
    %v764 = vcombine.high %v484, %v548
    %v766 = vunpack.c.l.s4 1983009808
    %v767 = vunpack.c.0.s8 %v766
    %v768 = vlaneseq
    %v769 = vshrl.u32 %v768, 7
    %v770 = vsub.s32 %v767, %v769
    %v771 = vrot.slane %v763, %v770
    %v773 = vunpack.c.l.s4 1983009808
    %v774 = vunpack.c.0.s8 %v773
    %v775 = vlaneseq
    %v776 = vshrl.u32 %v775, 7
    %v777 = vsub.s32 %v774, %v776
    %v778 = vrot.slane %v764, %v777
    %v779 = vcombine.low %v516, %v580
    %v780 = vcombine.high %v516, %v580
    %v782 = vunpack.c.l.s4 1983009808
    %v783 = vunpack.c.0.s8 %v782
    %v784 = vlaneseq
    %v785 = vshrl.u32 %v784, 7
    %v786 = vsub.s32 %v783, %v785
    %v787 = vrot.slane %v779, %v786
    %v789 = vunpack.c.l.s4 1983009808
    %v790 = vunpack.c.0.s8 %v789
    %v791 = vlaneseq
    %v792 = vshrl.u32 %v791, 7
    %v793 = vsub.s32 %v790, %v792
    %v794 = vrot.slane %v780, %v793
    %v795 = vcombine.low %v739, %v755
    %v796 = vcombine.high %v739, %v755
    %v798 = vunpack.c.l.s4 1934713408
    %v799 = vunpack.c.0.s8 %v798
    %v800 = vlaneseq
    %v801 = vshrl.u32 %v800, 7
    %v802 = vsub.s32 %v799, %v801
    %v803 = vrot.slane %v795, %v802
    %v805 = vunpack.c.l.s4 1934713408
    %v806 = vunpack.c.0.s8 %v805
    %v807 = vlaneseq
    %v808 = vshrl.u32 %v807, 7
    %v809 = vsub.s32 %v806, %v808
    %v810 = vrot.slane %v796, %v809
    %v811 = vcombine.low %v746, %v762
    %v812 = vcombine.high %v746, %v762
    %v814 = vunpack.c.l.s4 1934713408
    %v815 = vunpack.c.0.s8 %v814
    %v816 = vlaneseq
    %v817 = vshrl.u32 %v816, 7
    %v818 = vsub.s32 %v815, %v817
    %v819 = vrot.slane %v811, %v818
    %v821 = vunpack.c.l.s4 1934713408
    %v822 = vunpack.c.0.s8 %v821
    %v823 = vlaneseq
    %v824 = vshrl.u32 %v823, 7
    %v825 = vsub.s32 %v822, %v824
    %v826 = vrot.slane %v812, %v825
    %v827 = vcombine.low %v771, %v787
    %v828 = vcombine.high %v771, %v787
    %v830 = vunpack.c.l.s4 1934713408
    %v831 = vunpack.c.0.s8 %v830
    %v832 = vlaneseq
    %v833 = vshrl.u32 %v832, 7
    %v834 = vsub.s32 %v831, %v833
    %v835 = vrot.slane %v827, %v834
    %v837 = vunpack.c.l.s4 1934713408
    %v838 = vunpack.c.0.s8 %v837
    %v839 = vlaneseq
    %v840 = vshrl.u32 %v839, 7
    %v841 = vsub.s32 %v838, %v840
    %v842 = vrot.slane %v828, %v841
    %v843 = vcombine.low %v778, %v794
    %v844 = vcombine.high %v778, %v794
    %v846 = vunpack.c.l.s4 1934713408
    %v847 = vunpack.c.0.s8 %v846
    %v848 = vlaneseq
    %v849 = vshrl.u32 %v848, 7
    %v850 = vsub.s32 %v847, %v849
    %v851 = vrot.slane %v843, %v850
    %v853 = vunpack.c.l.s4 1934713408
    %v854 = vunpack.c.0.s8 %v853
    %v855 = vlaneseq
    %v856 = vshrl.u32 %v855, 7
    %v857 = vsub.s32 %v854, %v856
    %v858 = vrot.slane %v844, %v857
    %v859 = vcombine.low %v803, %v835
    %v860 = vcombine.high %v803, %v835
    %v861 = vcombine.low %v810, %v842
    %v862 = vcombine.high %v810, %v842
    %v863 = vcombine.low %v819, %v851
    %v864 = vcombine.high %v819, %v851
    %v865 = vcombine.low %v826, %v858
    %v866 = vcombine.high %v826, %v858
    %868 = vrot.lane.b32.xlu0 %v724, 16
    %v869 = vpop.permute.xlu0 %868
    %872 = vrot.lane.b32.xlu0 %v725, 32
    %v873 = vpop.permute.xlu0 %872
    %876 = vrot.lane.b32.xlu0 %v726, 48
    %v877 = vpop.permute.xlu0 %876
    %880 = vrot.lane.b32.xlu0 %v727, 64
    %v881 = vpop.permute.xlu0 %880
    %884 = vrot.lane.b32.xlu0 %v728, 80
    %v885 = vpop.permute.xlu0 %884
    %888 = vrot.lane.b32.xlu0 %v729, 96
    %v889 = vpop.permute.xlu0 %888
    %892 = vrot.lane.b32.xlu0 %v730, 112
    %v893 = vpop.permute.xlu0 %892
    %896 = vrot.lane.b32.xlu0 %v860, 16
    %v897 = vpop.permute.xlu0 %896
    %900 = vrot.lane.b32.xlu0 %v861, 32
    %v901 = vpop.permute.xlu0 %900
    %904 = vrot.lane.b32.xlu0 %v862, 48
    %v905 = vpop.permute.xlu0 %904
    %908 = vrot.lane.b32.xlu0 %v863, 64
    %v909 = vpop.permute.xlu0 %908
    %912 = vrot.lane.b32.xlu0 %v864, 80
    %v913 = vpop.permute.xlu0 %912
    %916 = vrot.lane.b32.xlu0 %v865, 96
    %v917 = vpop.permute.xlu0 %916
    %920 = vrot.lane.b32.xlu0 %v866, 112
    %v921 = vpop.permute.xlu0 %920
    %vm923 = vcmask 130048
    %v924 = vsel %vm923, %v723, %v869
    %vm925 = vcmask 261120
    %v926 = vsel %vm925, %v924, %v873
    %vm927 = vcmask 392192
    %v928 = vsel %vm927, %v926, %v877
    %vm929 = vcmask 523264
    %v930 = vsel %vm929, %v928, %v881
    %vm931 = vcmask 654336
    %v932 = vsel %vm931, %v930, %v885
    %vm933 = vcmask 785408
    %v934 = vsel %vm933, %v932, %v889
    %vm935 = vcmask 916480
    %v936 = vsel %vm935, %v934, %v893
    %v937 = vsel %vm923, %v859, %v897
    %v938 = vsel %vm925, %v937, %v901
    %v939 = vsel %vm927, %v938, %v905
    %v940 = vsel %vm929, %v939, %v909
    %v941 = vsel %vm931, %v940, %v913
    %v942 = vsel %vm933, %v941, %v917
    %v943 = vsel %vm935, %v942, %v921
    %944 = vst [vmem:[#allocation5] sm:$0xff] %v936
    %945 = vst [vmem:[#allocation5 + $0x8] sm:$0xff] %v943
    // Predicated region
    $region10: #{tpu_custom_call.1} parent=1 // pred_check
      _
    $region11: #{tpu_custom_call.1} parent=1 // pred_check_branch
      %947 = sbr.rel (0) target = $region13
    $region12: #{tpu_custom_call.1} parent=1 // pred_region
      %s949 = ssub.s32 256, 256
      %950 = vsyncadd [#allocation4], %s949
      %s952 = sshll.u32 [#allocation5], 4
      %s953 = int_to_ptr.vmem [resolvable:$true] %s952
      %955 = dma.vmem_to_hbm [thread:$0]  %s953, 256, %s1, [#allocation4]
    $region13: #{tpu_custom_call.1} parent=1 // pred_fallthru
      _
    // Predicated region
    $region14: #{tpu_custom_call.1} parent=1 // pred_check
      _
    $region15: #{tpu_custom_call.1} parent=1 // pred_check_branch
      %957 = sbr.rel (0) target = $region17
    $region16: #{tpu_custom_call.1} parent=1 // pred_region
      %958 = dma.done [#allocation4], 256
    $region17: #{tpu_custom_call.1} parent=1 // pred_fallthru
      _
    %959 = vsyncpa [#allocation3], 1
    %960 = vsyncpa [#allocation4], 1

</llo_original>
